<compile_context>
chip_gen: v6e
topology: v6e:2x2x1
jax: 0.10.0
libtpu: 0.0.40
codegen_flags: <defaults>
</compile_context>

<pallas_src>
import jax
import jax.numpy as jnp
from jax.experimental import pallas as pl
from jax.experimental.pallas import tpu as pltpu


_SUBLANE = 8
_LANE = 128


def _round_up(x, m):
    return (x + m - 1) // m * m


def _mlp_kernel(x_ref, w1_ref, b1_ref, w2_ref, b2_ref, w3_ref, b3_ref, o_ref):
    # layer1 + ReLU (bf16 operands on the MXU, f32 accumulation / bias add)
    x = x_ref[...].astype(jnp.bfloat16)
    h1 = jnp.dot(x, w1_ref[...], preferred_element_type=jnp.float32)
    h1 = jnp.maximum(h1 + b1_ref[...], 0.0)
    # dropout (eval mode) -> identity
    # layer2 + ReLU
    h2 = jnp.dot(h1.astype(jnp.bfloat16), w2_ref[...],
                 preferred_element_type=jnp.float32)
    h2 = jnp.maximum(h2 + b2_ref[...], 0.0)
    # output layer (no activation)
    out = jnp.dot(h2.astype(jnp.bfloat16), w3_ref[...],
                  preferred_element_type=jnp.float32)
    o_ref[...] = (out + b3_ref[...]).astype(o_ref.dtype)


def prepare_params(params):
    """One-time device-param prep: weights -> bf16, biases -> (1, n) f32.

    Call once and reuse across forward calls (avoids per-call cast launches).
    """
    w1, b1, w2, b2, w3, b3 = params
    as_row = lambda b: jnp.asarray(b, jnp.float32).reshape(1, -1)
    return (w1.astype(jnp.bfloat16), as_row(b1),
            w2.astype(jnp.bfloat16), as_row(b2),
            w3.astype(jnp.bfloat16), as_row(b3))


def yoga_classifier_forward(x, prepared_params, *, tile_b=1024):
    """Fused forward pass. x: (B, F) float32. Returns (B, num_classes) float32."""
    w1, b1, w2, b2, w3, b3 = prepared_params
    B, F = x.shape
    H = w1.shape[1]
    C = w3.shape[1]

    # Batch tiling: aim for an even grid of >= 2 balanced steps (keeps both
    # v7x TensorCores busy via dimension_semantics=("parallel",); harmless on
    # single-TC v5e/v6e) while keeping tiles large (<= tile_b rows) so
    # per-step pipeline overhead is amortized.
    target_steps = max(2, 2 * pl.cdiv(B, 2 * tile_b))
    tb = _round_up(max(pl.cdiv(B, target_steps), 1), _SUBLANE)
    tb = min(tb, _round_up(B, _SUBLANE))
    grid = (pl.cdiv(B, tb),)

    # VMEM budget from lane-padded tile sizes, 2x headroom, capped well below
    # v7x's 64 MiB per-TC VMEM.
    Fl, Hl, Cl = (_round_up(d, _LANE) for d in (F, H, C))
    vmem_bytes = (
        2 * tb * Fl * 4                          # x tiles (f32, double-buffered)
        + 2 * tb * Cl * 4                        # out tiles (f32, double-buffered)
        + (Fl * Hl + Hl * Hl + Hl * Cl) * 2      # weights (bf16, single-buffered)
        + (2 * Hl + Cl) * 4                      # biases (f32)
        + 6 * tb * Hl * 4                        # live intermediates (generous)
    )
    vmem_limit = int(min(max(2 * vmem_bytes, 4 << 20), 48 << 20))

    # Real cost of this call (tiny matmuls, HBM-traffic dominated).
    flops = int(2 * B * (F * H + H * H + H * C))
    bytes_accessed = int(
        B * F * 4                                # x read
        + (F * H + H * H + H * C) * 2            # bf16 weights
        + (2 * H + C) * 4                        # f32 biases
        + B * C * 4                              # f32 logits write
    )
    cost = pl.CostEstimate(flops=flops, transcendentals=0,
                           bytes_accessed=bytes_accessed)

    # Resident operands: same block every step -> single buffer.
    def resident(shape):
        return pl.BlockSpec(shape, lambda i: (0, 0),
                            pipeline_mode=pl.Buffered(1))

    out = pl.pallas_call(
        _mlp_kernel,
        out_shape=jax.ShapeDtypeStruct((B, C), jnp.float32),
        grid=grid,
        in_specs=[
            pl.BlockSpec((tb, F), lambda i: (i, 0)),   # x: batch-tiled, raw f32
            resident((F, H)), resident((1, H)),
            resident((H, H)), resident((1, H)),
            resident((H, C)), resident((1, C)),
        ],
        out_specs=pl.BlockSpec((tb, C), lambda i: (i, 0)),
        compiler_params=pltpu.CompilerParams(
            dimension_semantics=("parallel",),
            vmem_limit_bytes=vmem_limit,
        ),
        cost_estimate=cost,
    )(x, w1, b1, w2, b2, w3, b3)

    return out


def init_params(key, input_length, num_classes, hidden=64):
    """Deterministic init mirroring nn.Linear's U(-1/sqrt(fan_in), 1/sqrt(fan_in))."""
    ks = jax.random.split(key, 6)

    def linear(kw, kb, fan_in, fan_out):
        bound = 1.0 / jnp.sqrt(jnp.float32(fan_in))
        w = jax.random.uniform(kw, (fan_in, fan_out), jnp.float32, -bound, bound)
        b = jax.random.uniform(kb, (fan_out,), jnp.float32, -bound, bound)
        return w, b

    w1, b1 = linear(ks[0], ks[1], input_length, hidden)
    w2, b2 = linear(ks[2], ks[3], hidden, hidden)
    w3, b3 = linear(ks[4], ks[5], hidden, num_classes)
    return (w1, b1, w2, b2, w3, b3)


def _reference_f32(x, params):
    w1, b1, w2, b2, w3, b3 = params
    h = jnp.maximum(x @ w1 + b1, 0.0)
    h = jnp.maximum(h @ w2 + b2, 0.0)
    return h @ w3 + b3


def _reference_bf16(x, params):
    """Mirror of the kernel's precision policy (bf16 operands, f32 accum/bias)."""
    w1, b1, w2, b2, w3, b3 = params
    dot = lambda a, b: jnp.dot(a.astype(jnp.bfloat16), b.astype(jnp.bfloat16),
                               preferred_element_type=jnp.float32)
    h = jnp.maximum(dot(x, w1) + b1, 0.0)
    h = jnp.maximum(dot(h, w2) + b2, 0.0)
    return dot(h, w3) + b3


if __name__ == "__main__":
    key = jax.random.PRNGKey(0)
    batch = 100              # ragged vs. the 2-step grid -> exercises edge masking
    input_length = 34        # 17 pose keypoints x (x, y)
    num_classes = 5

    k_x, k_p = jax.random.split(key)
    x = jax.random.normal(k_x, (batch, input_length), jnp.float32)
    params = init_params(k_p, input_length, num_classes)
    dev_params = prepare_params(params)   # one-time prep, reused across calls

    out = yoga_classifier_forward(x, dev_params)
    out = jax.block_until_ready(out)
    assert out.shape == (batch, num_classes)

    # Tight check against a reference mirroring the kernel's bf16/f32 policy.
    ref_bf16 = _reference_bf16(x, params)
    assert jnp.allclose(out, ref_bf16, atol=2e-3, rtol=2e-3)

    # Loose check against the full-f32 PyTorch-equivalent math.
    ref_f32 = _reference_f32(x, params)
    assert jnp.allclose(out, ref_f32, atol=5e-2, rtol=5e-2)

    print("KERNEL_OK")
</pallas_src>

<mosaic_0001>
module attributes {stable_mosaic.version = 11 : i64} {
  func.func @_mlp_kernel(%arg0: i32, %arg1: memref<56x34xf32, #tpu.memory_space<vmem>>, %arg2: memref<34x64xbf16, #tpu.memory_space<vmem>>, %arg3: memref<1x64xf32, #tpu.memory_space<vmem>>, %arg4: memref<64x64xbf16, #tpu.memory_space<vmem>>, %arg5: memref<1x64xf32, #tpu.memory_space<vmem>>, %arg6: memref<64x5xbf16, #tpu.memory_space<vmem>>, %arg7: memref<1x5xf32, #tpu.memory_space<vmem>>, %arg8: memref<56x5xf32, #tpu.memory_space<vmem>>) attributes {dimension_semantics = [#tpu.dimension_semantics<parallel>], iteration_bounds = array<i64: 2>, scalar_prefetch = 0 : i64, scratch_operands = 0 : i64, tpu.core_type = #tpu.core_type<tc>, window_params = [{transform_indices = @transform_0, window_bounds = array<i64: 56, 34>}, {pipeline_mode = #tpu.pipeline_mode<synchronous>, transform_indices = @transform_1, window_bounds = array<i64: 34, 64>}, {pipeline_mode = #tpu.pipeline_mode<synchronous>, transform_indices = @transform_2, window_bounds = array<i64: 1, 64>}, {pipeline_mode = #tpu.pipeline_mode<synchronous>, transform_indices = @transform_3, window_bounds = array<i64: 64, 64>}, {pipeline_mode = #tpu.pipeline_mode<synchronous>, transform_indices = @transform_4, window_bounds = array<i64: 1, 64>}, {pipeline_mode = #tpu.pipeline_mode<synchronous>, transform_indices = @transform_5, window_bounds = array<i64: 64, 5>}, {pipeline_mode = #tpu.pipeline_mode<synchronous>, transform_indices = @transform_6, window_bounds = array<i64: 1, 5>}, {transform_indices = @transform_7, window_bounds = array<i64: 56, 5>}]} {
    %c0 = arith.constant 0 : index
    %c0_0 = arith.constant 0 : index
    %0 = vector.load %arg1[%c0, %c0_0] : memref<56x34xf32, #tpu.memory_space<vmem>>, vector<56x34xf32>
    %1 = arith.truncf %0 : vector<56x34xf32> to vector<56x34xbf16>
    %c0_1 = arith.constant 0 : index
    %c0_2 = arith.constant 0 : index
    %2 = vector.load %arg2[%c0_1, %c0_2] : memref<34x64xbf16, #tpu.memory_space<vmem>>, vector<34x64xbf16>
    %cst = arith.constant dense<0.000000e+00> : vector<56x64xf32>
    %3 = tpu.matmul %1, %2, %cst {dimension_numbers = #tpu.dot_dimension_numbers<[1], [0], [0], [1], [0, 0, 1, 1], [], []>} : vector<56x34xbf16>, vector<34x64xbf16>, vector<56x64xf32> -> vector<56x64xf32>
    %c0_3 = arith.constant 0 : index
    %c0_4 = arith.constant 0 : index
    %4 = vector.load %arg3[%c0_3, %c0_4] : memref<1x64xf32, #tpu.memory_space<vmem>>, vector<1x64xf32>
    %5 = vector.broadcast %4 : vector<1x64xf32> to vector<56x64xf32>
    %6 = arith.addf %3, %5 : vector<56x64xf32>
    %cst_5 = arith.constant 0.000000e+00 : f32
    %7 = vector.broadcast %cst_5 : f32 to vector<56x64xf32>
    %8 = arith.maximumf %6, %7 : vector<56x64xf32>
    %9 = arith.truncf %8 : vector<56x64xf32> to vector<56x64xbf16>
    %c0_6 = arith.constant 0 : index
    %c0_7 = arith.constant 0 : index
    %10 = vector.load %arg4[%c0_6, %c0_7] : memref<64x64xbf16, #tpu.memory_space<vmem>>, vector<64x64xbf16>
    %cst_8 = arith.constant dense<0.000000e+00> : vector<56x64xf32>
    %11 = tpu.matmul %9, %10, %cst_8 {dimension_numbers = #tpu.dot_dimension_numbers<[1], [0], [0], [1], [0, 0, 1, 1], [], []>} : vector<56x64xbf16>, vector<64x64xbf16>, vector<56x64xf32> -> vector<56x64xf32>
    %c0_9 = arith.constant 0 : index
    %c0_10 = arith.constant 0 : index
    %12 = vector.load %arg5[%c0_9, %c0_10] : memref<1x64xf32, #tpu.memory_space<vmem>>, vector<1x64xf32>
    %13 = vector.broadcast %12 : vector<1x64xf32> to vector<56x64xf32>
    %14 = arith.addf %11, %13 : vector<56x64xf32>
    %cst_11 = arith.constant 0.000000e+00 : f32
    %15 = vector.broadcast %cst_11 : f32 to vector<56x64xf32>
    %16 = arith.maximumf %14, %15 : vector<56x64xf32>
    %17 = arith.truncf %16 : vector<56x64xf32> to vector<56x64xbf16>
    %c0_12 = arith.constant 0 : index
    %c0_13 = arith.constant 0 : index
    %18 = vector.load %arg6[%c0_12, %c0_13] : memref<64x5xbf16, #tpu.memory_space<vmem>>, vector<64x5xbf16>
    %cst_14 = arith.constant dense<0.000000e+00> : vector<56x5xf32>
    %19 = tpu.matmul %17, %18, %cst_14 {dimension_numbers = #tpu.dot_dimension_numbers<[1], [0], [0], [1], [0, 0, 1, 1], [], []>} : vector<56x64xbf16>, vector<64x5xbf16>, vector<56x5xf32> -> vector<56x5xf32>
    %c0_15 = arith.constant 0 : index
    %c0_16 = arith.constant 0 : index
    %20 = vector.load %arg7[%c0_15, %c0_16] : memref<1x5xf32, #tpu.memory_space<vmem>>, vector<1x5xf32>
    %21 = vector.broadcast %20 : vector<1x5xf32> to vector<56x5xf32>
    %22 = arith.addf %19, %21 : vector<56x5xf32>
    %c0_17 = arith.constant 0 : index
    %c0_18 = arith.constant 0 : index
    %23 = vector.load %arg8[%c0_17, %c0_18] : memref<56x5xf32, #tpu.memory_space<vmem>>, vector<56x5xf32>
    tpu.vector_store %arg8[%c0_17, %c0_18], %22 {strides = array<i32>} : memref<56x5xf32, #tpu.memory_space<vmem>>, vector<56x5xf32>,
    return
  }
  func.func @transform_0(%arg0: i32) -> (i32, i32) {
    %c0_i32 = arith.constant 0 : i32
    %c0_i32_0 = arith.constant 0 : i32
    return %arg0, %c0_i32 : i32, i32
  }
  func.func @transform_1(%arg0: i32) -> (i32, i32) {
    %c0_i32 = arith.constant 0 : i32
    %c0_i32_0 = arith.constant 0 : i32
    %c0_i32_1 = arith.constant 0 : i32
    return %c0_i32, %c0_i32_0 : i32, i32
  }
  func.func @transform_2(%arg0: i32) -> (i32, i32) {
    %c0_i32 = arith.constant 0 : i32
    %c0_i32_0 = arith.constant 0 : i32
    %c0_i32_1 = arith.constant 0 : i32
    return %c0_i32, %c0_i32_0 : i32, i32
  }
  func.func @transform_3(%arg0: i32) -> (i32, i32) {
    %c0_i32 = arith.constant 0 : i32
    %c0_i32_0 = arith.constant 0 : i32
    %c0_i32_1 = arith.constant 0 : i32
    return %c0_i32, %c0_i32_0 : i32, i32
  }
  func.func @transform_4(%arg0: i32) -> (i32, i32) {
    %c0_i32 = arith.constant 0 : i32
    %c0_i32_0 = arith.constant 0 : i32
    %c0_i32_1 = arith.constant 0 : i32
    return %c0_i32, %c0_i32_0 : i32, i32
  }
  func.func @transform_5(%arg0: i32) -> (i32, i32) {
    %c0_i32 = arith.constant 0 : i32
    %c0_i32_0 = arith.constant 0 : i32
    %c0_i32_1 = arith.constant 0 : i32
    return %c0_i32, %c0_i32_0 : i32, i32
  }
  func.func @transform_6(%arg0: i32) -> (i32, i32) {
    %c0_i32 = arith.constant 0 : i32
    %c0_i32_0 = arith.constant 0 : i32
    %c0_i32_1 = arith.constant 0 : i32
    return %c0_i32, %c0_i32_0 : i32, i32
  }
  func.func @transform_7(%arg0: i32) -> (i32, i32) {
    %c0_i32 = arith.constant 0 : i32
    %c0_i32_0 = arith.constant 0 : i32
    return %arg0, %c0_i32 : i32, i32
  }
}

</mosaic_0001>

<llo_original>
// kernel: tpu_custom_call.1
$region0: #{tpu_custom_call.1}
  #allocation0 [shape = 'u32[]', space=smem, size = 0x4, offset = 0x4, fixed_abs, tag = 'smem constant byte address 0x4 - core index']
  #allocation1 [shape = 'u32[144,128]{1,0:T(1,128)}', space=vmem, size = 0x12000, scoped, tag = 'internal scratch']
  %s0 = inlined_call_operand.vmem [shape: f32[100,34], index: 0, kind: input, shape index: {}]
  %s1 = inlined_call_operand.vmem [shape: bf16[34,64], index: 1, kind: input, shape index: {}]
  %s2 = inlined_call_operand.vmem [shape: f32[1,64], index: 2, kind: input, shape index: {}]
  %s3 = inlined_call_operand.vmem [shape: bf16[64,64], index: 3, kind: input, shape index: {}]
  %s4 = inlined_call_operand.vmem [shape: f32[1,64], index: 4, kind: input, shape index: {}]
  %s5 = inlined_call_operand.vmem [shape: bf16[64,5], index: 5, kind: input, shape index: {}]
  %s6 = inlined_call_operand.vmem [shape: f32[1,5], index: 6, kind: input, shape index: {}]
  %s7 = inlined_call_operand.vmem [shape: f32[100,5], index: 7, kind: output, shape index: {}]
  %s8 = sld [smem:[#allocation0]]
  $region109: #{tpu_custom_call.1} parent=0
    _
  %s10 = ssub.s32 1, %s8
  %s11 = scalar_select 0, %s10, %s8
  $region1: #{tpu_custom_call.1} parent=0
    #allocation2 [shape = 'u8[57344]{0}', space=vmem, size = 0xe000, scoped, tag = 'output window, operand 0']
    loop: start=0, step=1, limit=4
    $region2: #{tpu_custom_call.1} parent=1 // loop_pre_header
      _
    $region3: #{tpu_custom_call.1} parent=1 // loop_header
      %s13 = sphi 0, %s17
      %p14 = scmp.ge.s32.totalorder %s13, 4
      %s23 = sphi 0, %s25
      %s26 = sphi 0, %s23
      %s27 = sphi 0, %s26
      %s43 = sphi 0, %s27
      %s47 = sphi 0, %s47
      %s49 = sphi 0, %s47
      %s50 = sphi 0, %s49
      %s64 = sphi 0, %s50
      %s68 = sphi 0, %s68
      %s70 = sphi 0, %s68
      %s71 = sphi 0, %s70
      %s85 = sphi 0, %s71
      %s89 = sphi 0, %s89
      %s91 = sphi 0, %s89
      %s92 = sphi 0, %s91
      %s106 = sphi 0, %s92
      %s110 = sphi 0, %s110
      %s112 = sphi 0, %s110
      %s113 = sphi 0, %s112
      %s127 = sphi 0, %s113
      %s131 = sphi 0, %s131
      %s133 = sphi 0, %s131
      %s134 = sphi 0, %s133
      %s148 = sphi 0, %s134
      %s152 = sphi 0, %s152
      %s154 = sphi 0, %s152
      %s155 = sphi 0, %s154
      %s169 = sphi 0, %s155
      %s175 = sphi 0, %s177
      %s178 = sphi 0, %s175
      %s179 = sphi 0, %s178
      %s195 = sphi 0, %s179
    $region4: #{tpu_custom_call.1} parent=1 // loop_header_branch
      %16 = sbr.rel (%p14) target = $region8
    $region5: #{tpu_custom_call.1} parent=1 // loop_body
      %s18 = ssub.s32 %s13, 1
      %s19 = ssub.s32 %s13, 2
      %s20 = sadd.s32 %s13, 1
      %s21 = ssub.s32 %s13, %s20
      %p22 = scmp.eq.s32.totalorder %s21, 0
      %s24 = sadd.s32 %s23, 1
      %s25 = scalar_select %p22, %s23, %s24
      %p28 = pneg %p22
      %p29 = scmp.eq.s32.totalorder %s13, 1
      %p30 = por %p28, %p29
      %p31 = scmp.ne.s32.totalorder %s23, %s26
      %p32 = scmp.eq.s32.totalorder %s13, 0
      %p33 = por %p31, %p32
      %p34 = scmp.ne.s32.totalorder %s23, %s26
      %p35 = scmp.eq.s32.totalorder %s18, 1
      %p36 = por %p34, %p35
      %p37 = scmp.ne.s32.totalorder %s26, %s27
      %p38 = scmp.eq.s32.totalorder %s18, 0
      %p39 = por %p37, %p38
      %p40 = scmp.ne.s32.totalorder %s26, %s27
      %p41 = scmp.eq.s32.totalorder %s19, 1
      %p42 = por %p40, %p41
      %p44 = scmp.ne.s32.totalorder %s27, %s43
      %p45 = scmp.eq.s32.totalorder %s19, 0
      %p46 = por %p44, %p45
      %s48 = sadd.s32 %s47, 1
      %p51 = scmp.eq.s32.totalorder %s13, 1
      %p52 = scmp.ne.s32.totalorder %s47, %s49
      %p53 = scmp.eq.s32.totalorder %s13, 0
      %p54 = por %p52, %p53
      %p55 = scmp.ne.s32.totalorder %s47, %s49
      %p56 = scmp.eq.s32.totalorder %s18, 1
      %p57 = por %p55, %p56
      %p58 = scmp.ne.s32.totalorder %s49, %s50
      %p59 = scmp.eq.s32.totalorder %s18, 0
      %p60 = por %p58, %p59
      %p61 = scmp.ne.s32.totalorder %s49, %s50
      %p62 = scmp.eq.s32.totalorder %s19, 1
      %p63 = por %p61, %p62
      %p65 = scmp.ne.s32.totalorder %s50, %s64
      %p66 = scmp.eq.s32.totalorder %s19, 0
      %p67 = por %p65, %p66
      %s69 = sadd.s32 %s68, 1
      %p72 = scmp.eq.s32.totalorder %s13, 1
      %p73 = scmp.ne.s32.totalorder %s68, %s70
      %p74 = scmp.eq.s32.totalorder %s13, 0
      %p75 = por %p73, %p74
      %p76 = scmp.ne.s32.totalorder %s68, %s70
      %p77 = scmp.eq.s32.totalorder %s18, 1
      %p78 = por %p76, %p77
      %p79 = scmp.ne.s32.totalorder %s70, %s71
      %p80 = scmp.eq.s32.totalorder %s18, 0
      %p81 = por %p79, %p80
      %p82 = scmp.ne.s32.totalorder %s70, %s71
      %p83 = scmp.eq.s32.totalorder %s19, 1
      %p84 = por %p82, %p83
      %p86 = scmp.ne.s32.totalorder %s71, %s85
      %p87 = scmp.eq.s32.totalorder %s19, 0
      %p88 = por %p86, %p87
      %s90 = sadd.s32 %s89, 1
      %p93 = scmp.eq.s32.totalorder %s13, 1
      %p94 = scmp.ne.s32.totalorder %s89, %s91
      %p95 = scmp.eq.s32.totalorder %s13, 0
      %p96 = por %p94, %p95
      %p97 = scmp.ne.s32.totalorder %s89, %s91
      %p98 = scmp.eq.s32.totalorder %s18, 1
      %p99 = por %p97, %p98
      %p100 = scmp.ne.s32.totalorder %s91, %s92
      %p101 = scmp.eq.s32.totalorder %s18, 0
      %p102 = por %p100, %p101
      %p103 = scmp.ne.s32.totalorder %s91, %s92
      %p104 = scmp.eq.s32.totalorder %s19, 1
      %p105 = por %p103, %p104
      %p107 = scmp.ne.s32.totalorder %s92, %s106
      %p108 = scmp.eq.s32.totalorder %s19, 0
      %p109 = por %p107, %p108
      %s111 = sadd.s32 %s110, 1
      %p114 = scmp.eq.s32.totalorder %s13, 1
      %p115 = scmp.ne.s32.totalorder %s110, %s112
      %p116 = scmp.eq.s32.totalorder %s13, 0
      %p117 = por %p115, %p116
      %p118 = scmp.ne.s32.totalorder %s110, %s112
      %p119 = scmp.eq.s32.totalorder %s18, 1
      %p120 = por %p118, %p119
      %p121 = scmp.ne.s32.totalorder %s112, %s113
      %p122 = scmp.eq.s32.totalorder %s18, 0
      %p123 = por %p121, %p122
      %p124 = scmp.ne.s32.totalorder %s112, %s113
      %p125 = scmp.eq.s32.totalorder %s19, 1
      %p126 = por %p124, %p125
      %p128 = scmp.ne.s32.totalorder %s113, %s127
      %p129 = scmp.eq.s32.totalorder %s19, 0
      %p130 = por %p128, %p129
      %s132 = sadd.s32 %s131, 1
      %p135 = scmp.eq.s32.totalorder %s13, 1
      %p136 = scmp.ne.s32.totalorder %s131, %s133
      %p137 = scmp.eq.s32.totalorder %s13, 0
      %p138 = por %p136, %p137
      %p139 = scmp.ne.s32.totalorder %s131, %s133
      %p140 = scmp.eq.s32.totalorder %s18, 1
      %p141 = por %p139, %p140
      %p142 = scmp.ne.s32.totalorder %s133, %s134
      %p143 = scmp.eq.s32.totalorder %s18, 0
      %p144 = por %p142, %p143
      %p145 = scmp.ne.s32.totalorder %s133, %s134
      %p146 = scmp.eq.s32.totalorder %s19, 1
      %p147 = por %p145, %p146
      %p149 = scmp.ne.s32.totalorder %s134, %s148
      %p150 = scmp.eq.s32.totalorder %s19, 0
      %p151 = por %p149, %p150
      %s153 = sadd.s32 %s152, 1
      %p156 = scmp.eq.s32.totalorder %s13, 1
      %p157 = scmp.ne.s32.totalorder %s152, %s154
      %p158 = scmp.eq.s32.totalorder %s13, 0
      %p159 = por %p157, %p158
      %p160 = scmp.ne.s32.totalorder %s152, %s154
      %p161 = scmp.eq.s32.totalorder %s18, 1
      %p162 = por %p160, %p161
      %p163 = scmp.ne.s32.totalorder %s154, %s155
      %p164 = scmp.eq.s32.totalorder %s18, 0
      %p165 = por %p163, %p164
      %p166 = scmp.ne.s32.totalorder %s154, %s155
      %p167 = scmp.eq.s32.totalorder %s19, 1
      %p168 = por %p166, %p167
      %p170 = scmp.ne.s32.totalorder %s155, %s169
      %p171 = scmp.eq.s32.totalorder %s19, 0
      %p172 = por %p170, %p171
      %s173 = ssub.s32 %s13, %s20
      %p174 = scmp.eq.s32.totalorder %s173, 0
      %s176 = sadd.s32 %s175, 1
      %s177 = scalar_select %p174, %s175, %s176
      %p180 = pneg %p174
      %p181 = scmp.eq.s32.totalorder %s13, 1
      %p182 = por %p180, %p181
      %p183 = scmp.ne.s32.totalorder %s175, %s178
      %p184 = scmp.eq.s32.totalorder %s13, 0
      %p185 = por %p183, %p184
      %p186 = scmp.ne.s32.totalorder %s175, %s178
      %p187 = scmp.eq.s32.totalorder %s18, 1
      %p188 = por %p186, %p187
      %p189 = scmp.ne.s32.totalorder %s178, %s179
      %p190 = scmp.eq.s32.totalorder %s18, 0
      %p191 = por %p189, %p190
      %p192 = scmp.ne.s32.totalorder %s178, %s179
      %p193 = scmp.eq.s32.totalorder %s19, 1
      %p194 = por %p192, %p193
      %p196 = scmp.ne.s32.totalorder %s179, %s195
      %p197 = scmp.eq.s32.totalorder %s19, 0
      %p198 = por %p196, %p197
      %p199 = scmp.le.s32.totalorder 1, %s13
      %p200 = scmp.lt.s32.totalorder %s13, 3
      %p201 = pnand %p199, %p200
      %p202 = pneg %p201
      // Predicated region
      $region9: #{tpu_custom_call.1} parent=5 // pred_check
        _
      $region10: #{tpu_custom_call.1} parent=5 // pred_check_branch
        %204 = sbr.rel (%p201) target = $region12
      $region11: #{tpu_custom_call.1} parent=5 // pred_region
        %s205 = ssub.s32 %s13, 1
        // Predicated region
        $region13: #{tpu_custom_call.1} parent=11 // pred_check
          %p206 = pneg %p60
        $region14: #{tpu_custom_call.1} parent=11 // pred_check_branch
          %208 = sbr.rel (%p206) target = $region16
        $region15: #{tpu_custom_call.1} parent=11 // pred_region
          _
        $region16: #{tpu_custom_call.1} parent=11 // pred_fallthru
          _
        // Predicated region
        $region17: #{tpu_custom_call.1} parent=11 // pred_check
          %p209 = pneg %p81
        $region18: #{tpu_custom_call.1} parent=11 // pred_check_branch
          %211 = sbr.rel (%p209) target = $region20
        $region19: #{tpu_custom_call.1} parent=11 // pred_region
          _
        $region20: #{tpu_custom_call.1} parent=11 // pred_fallthru
          _
        // Predicated region
        $region21: #{tpu_custom_call.1} parent=11 // pred_check
          %p212 = pneg %p102
        $region22: #{tpu_custom_call.1} parent=11 // pred_check_branch
          %214 = sbr.rel (%p212) target = $region24
        $region23: #{tpu_custom_call.1} parent=11 // pred_region
          _
        $region24: #{tpu_custom_call.1} parent=11 // pred_fallthru
          _
        // Predicated region
        $region25: #{tpu_custom_call.1} parent=11 // pred_check
          %p215 = pneg %p123
        $region26: #{tpu_custom_call.1} parent=11 // pred_check_branch
          %217 = sbr.rel (%p215) target = $region28
        $region27: #{tpu_custom_call.1} parent=11 // pred_region
          _
        $region28: #{tpu_custom_call.1} parent=11 // pred_fallthru
          _
        // Predicated region
        $region29: #{tpu_custom_call.1} parent=11 // pred_check
          %p218 = pneg %p144
        $region30: #{tpu_custom_call.1} parent=11 // pred_check_branch
          %220 = sbr.rel (%p218) target = $region32
        $region31: #{tpu_custom_call.1} parent=11 // pred_region
          _
        $region32: #{tpu_custom_call.1} parent=11 // pred_fallthru
          _
        // Predicated region
        $region33: #{tpu_custom_call.1} parent=11 // pred_check
          %p221 = pneg %p165
        $region34: #{tpu_custom_call.1} parent=11 // pred_check_branch
          %223 = sbr.rel (%p221) target = $region36
        $region35: #{tpu_custom_call.1} parent=11 // pred_region
          _
        $region36: #{tpu_custom_call.1} parent=11 // pred_fallthru
          _
      $region12: #{tpu_custom_call.1} parent=5 // pred_fallthru
        _
      %p224 = scmp.lt.s32.totalorder %s13, 2
      // Predicated region
      $region37: #{tpu_custom_call.1} parent=5 // pred_check
        %p225 = pneg %p224
      $region38: #{tpu_custom_call.1} parent=5 // pred_check_branch
        %227 = sbr.rel (%p225) target = $region40
      $region39: #{tpu_custom_call.1} parent=5 // pred_region
        // Predicated region
        $region41: #{tpu_custom_call.1} parent=39 // pred_check
          %p228 = pneg %p33
        $region42: #{tpu_custom_call.1} parent=39 // pred_check_branch
          %230 = sbr.rel (%p228) target = $region44
        $region43: #{tpu_custom_call.1} parent=39 // pred_region
          %s231 = smul.u32 7, %s13
          %s232 = ssub.s32 13, %s231
          %p233 = scmp.lt.s32.totalorder %s232, 7
          %s234 = scalar_select %p233, %s232, 7
          %s235 = smul.u32 128, %s234
          %p236 = scmp.lt.s32.totalorder %s231, 12
          %s237 = scalar_select %p236, %s231, 12
          %s238 = smul.addr %s237, 8
          %s239 = scalar_lea.vmem %s0, %s238
          %s240 = smul.u32 7, %s13
          %s241 = ssub.s32 13, %s240
          %p242 = scmp.lt.s32.totalorder %s241, 7
          %s243 = scalar_select %p242, %s241, 7
          %s244 = smul.u32 128, %s243
        $region44: #{tpu_custom_call.1} parent=39 // pred_fallthru
          _
      $region40: #{tpu_custom_call.1} parent=5 // pred_fallthru
        _
      %p245 = scmp.le.s32.totalorder 1, %s13
      %p246 = scmp.lt.s32.totalorder %s13, 3
      %p247 = pnand %p245, %p246
      %p248 = pneg %p247
      // Predicated region
      $region45: #{tpu_custom_call.1} parent=5 // pred_check
        _
      $region46: #{tpu_custom_call.1} parent=5 // pred_check_branch
        %250 = sbr.rel (%p247) target = $region48
      $region47: #{tpu_custom_call.1} parent=5 // pred_region
        %s251 = ssub.s32 %s13, 1
        %s252 = smul.u32 7, %s18
        %s253 = ssub.s32 13, %s252
        %p254 = scmp.lt.s32.totalorder %s253, 7
        %s255 = scalar_select %p254, %s253, 7
        %s256 = smul.u32 128, %s255
        %p257 = scmp.lt.s32.totalorder %s252, 12
        %s258 = scalar_select %p257, %s252, 12
        %s259 = smul.addr %s258, 8
        %s260 = scalar_lea.vmem %s0, %s259
        %p261 = pneg %p39
        %p262 = pneg %p36
        %p263 = pneg %p60
        %p264 = pneg %p57
        %p265 = pneg %p81
        %p266 = pneg %p78
        %p267 = pneg %p102
        %p268 = pneg %p99
        %p269 = pneg %p123
        %p270 = pneg %p120
        %p271 = pneg %p144
        %p272 = pneg %p141
        %p273 = pneg %p165
        %p274 = pneg %p162
        %p275 = pneg %p191
        %p276 = pneg %p188
        %s277 = sand.u32 %s178, 1
        %s278 = sand.u32 %s178, 1
        %s279 = smul.addr %s278, 56
        %s280 = scalar_lea.vmem [#allocation2], %s279
        %s281 = smul.u32 7, %s18
        %s282 = ssub.s32 13, %s281
        %p283 = scmp.lt.s32.totalorder %s282, 7
        %s284 = scalar_select %p283, %s282, 7
        %s285 = smul.u32 128, %s284
        %p286 = scmp.lt.s32.totalorder %s281, 12
        %s287 = scalar_select %p286, %s281, 12
        %s288 = smul.addr %s287, 8
        %s289 = scalar_lea.vmem %s0, %s288
        %s290 = smul.u32 7, %s18
        %s291 = ssub.s32 13, %s290
        %p292 = scmp.lt.s32.totalorder %s291, 7
        %s293 = scalar_select %p292, %s291, 7
        %s294 = smul.u32 128, %s293
        %s295 = smul.u32 7, %s18
        %s296 = ssub.s32 13, %s295
        %p297 = scmp.lt.s32.totalorder %s296, 7
        %s298 = scalar_select %p297, %s296, 7
        %s299 = smul.u32 128, %s298
        %v301 = vld [vmem:[%s289] sm:$0xff]
        %v302 = vld [vmem:[%s289 + $0x8] sm:$0xff]
        %v303 = vld [vmem:[%s289 + $0x10] sm:$0xff]
        %v304 = vld [vmem:[%s289 + $0x18] sm:$0xff]
        %v305 = vld [vmem:[%s289 + $0x20] sm:$0xff]
        %v306 = vld [vmem:[%s289 + $0x28] sm:$0xff]
        %v307 = vld [vmem:[%s289 + $0x30] sm:$0xff]
        %v308 = vpack.c.bf16 %v302, %v301
        %v309 = vpack.c.bf16 %v304, %v303
        %v310 = vpack.c.bf16 %v306, %v305
        %v311 = vpack.c.bf16 %v307, %v307
        %v312 = vld [vmem:[%s1] sm:$0xf]
        %v313 = vld [vmem:[%s1 + $0x4] sm:$0xf]
        %v314 = vld [vmem:[%s1 + $0x8] sm:$0xf]
        %v315 = vld [vmem:[%s1 + $0xc] sm:$0xf]
        %v316 = vld [vmem:[%s1 + $0x10] sm:$0x1]
        %v317 = vld [vmem:[%s2] sm:$0x1]
        %v319 = vlaneseq
        %v320 = vshrl.u32 %v319, 7
        %v321 = vsub.s32 0, %v320
        %v322 = vrot.slane %v317, %v321
        %v329 = vunpack.c.l.b16 %v312
        %v330 = vunpack.c.l.b16 %v313
        %v331 = vunpack.c.l.b16 %v314
        %v332 = vunpack.c.l.b16 %v315
        %v333 = vunpack.c.l.b16 %v316
        %v334 = vpack.c.b16 %v330, %v329
        %v335 = vpack.c.b16 %v332, %v331
        %v336 = vpack.c.b16 %v333, %v333
        %vm339 = vcmask 277504
        %v341 = vsel %vm339, %v308, 0
        %v344 = vsel %vm339, %v309, 0
        %v347 = vsel %vm339, %v310, 0
        %v350 = vsel %vm339, %v311, 0
        %vm352 = vcmask 1040384
        %v354 = vsel %vm352, %v336, 0
        %356 = vmatprep.subr.bf16.mxu0 0
        %357 = vmatpush1.bf16.msra.mxu0 0
        %358 = vmatprep.subr.bf16.mxu0 0
        %359 = vmatpush1.bf16.msra.mxu0 0
        %360 = vmatprep.subr.bf16.mxu0 0
        %361 = vmatpush1.bf16.msra.mxu0 0
        %362 = vmatprep.subr.bf16.mxu0 0
        %363 = vmatpush1.bf16.msra.mxu0 0
        %364 = vmatprep.subr.bf16.mxu0 0
        %365 = vmatpush1.bf16.msra.mxu0 0
        %366 = vmatprep.subr.bf16.mxu0 0
        %367 = vmatpush1.bf16.msra.mxu0 %v354
        %368 = vmatprep.subr.bf16.mxu0 0
        %369 = vmatpush1.bf16.msra.mxu0 %v335
        %370 = vmatprep.subr.bf16.mxu0 0
        %371 = vmatpush1.bf16.msra.mxu0 %v334
        %372 = vmatprep.subr.bf16.mxu0 0
        %373 = vmatpush2.bf16.msra.mxu0 0
        %374 = vmatprep.subr.bf16.mxu0 0
        %375 = vmatpush2.bf16.msra.mxu0 0
        %376 = vmatprep.subr.bf16.mxu0 0
        %377 = vmatpush2.bf16.msra.mxu0 0
        %378 = vmatprep.subr.bf16.mxu0 0
        %379 = vmatpush2.bf16.msra.mxu0 0
        %380 = vmatprep.subr.bf16.mxu0 0
        %381 = vmatpush2.bf16.msra.mxu0 0
        %382 = vmatprep.subr.bf16.mxu0 0
        %383 = vmatpush2.bf16.msra.mxu0 0
        %384 = vmatprep.subr.bf16.mxu0 0
        %385 = vmatpush2.bf16.msra.mxu0 0
        %386 = vmatprep.subr.bf16.mxu0 0
        %387 = vmatpush2.bf16.msra.mxu0 0
        %388 = vmatprep.mubr.bf16.mxu0 0
        %389 = vmatmul.mubr.bf16.gmra.mxu0 %v341
        %v390 = vpop.f32.mrf.mxu0
        %v391 = vadd.f32 %v322, %v390
        %v392 = vpop.f32.mrf.mxu0
        %v393 = vpop.f32.mrf.mxu0
        %v394 = vadd.f32 %v322, %v393
        %v395 = vpop.f32.mrf.mxu0
        %396 = vmatprep.mubr.bf16.mxu0 0
        %397 = vmatmul.mubr.bf16.gmra.mxu0 %v344
        %v398 = vpop.f32.mrf.mxu0
        %v399 = vadd.f32 %v322, %v398
        %v400 = vpop.f32.mrf.mxu0
        %v401 = vpop.f32.mrf.mxu0
        %v402 = vadd.f32 %v322, %v401
        %v403 = vpop.f32.mrf.mxu0
        %404 = vmatprep.mubr.bf16.mxu0 0
        %405 = vmatmul.mubr.bf16.gmra.mxu0 %v347
        %v406 = vpop.f32.mrf.mxu0
        %v407 = vadd.f32 %v322, %v406
        %v408 = vpop.f32.mrf.mxu0
        %v409 = vpop.f32.mrf.mxu0
        %v410 = vadd.f32 %v322, %v409
        %v411 = vpop.f32.mrf.mxu0
        %412 = vmatprep.mubr.bf16.mxu0 0
        %413 = vmatmul.mubr.bf16.gmra.mxu0 %v350
        %v414 = vpop.f32.mrf.mxu0
        %v415 = vadd.f32 %v322, %v414
        %v416 = vpop.f32.mrf.mxu0
        %v417 = vpop.f32.mrf.mxu0
        %v418 = vpop.f32.mrf.mxu0
        %419 = vdwg.mxu0
        %v420 = vmax.f32 %v391, 0.0
        %v421 = vmax.f32 %v394, 0.0
        %v422 = vmax.f32 %v399, 0.0
        %v423 = vmax.f32 %v402, 0.0
        %v424 = vmax.f32 %v407, 0.0
        %v425 = vmax.f32 %v410, 0.0
        %v426 = vmax.f32 %v415, 0.0
        %v427 = vpack.c.bf16 %v421, %v420
        %v428 = vpack.c.bf16 %v423, %v422
        %v429 = vpack.c.bf16 %v425, %v424
        %v430 = vpack.c.bf16 %v426, %v426
        %v431 = vld [vmem:[%s3] sm:$0xf]
        %v432 = vld [vmem:[%s3 + $0x4] sm:$0xf]
        %v433 = vld [vmem:[%s3 + $0x8] sm:$0xf]
        %v434 = vld [vmem:[%s3 + $0xc] sm:$0xf]
        %v435 = vld [vmem:[%s3 + $0x10] sm:$0xf]
        %v436 = vld [vmem:[%s3 + $0x14] sm:$0xf]
        %v437 = vld [vmem:[%s3 + $0x18] sm:$0xf]
        %v438 = vld [vmem:[%s3 + $0x1c] sm:$0xf]
        %v439 = vld [vmem:[%s4] sm:$0x1]
        %v441 = vlaneseq
        %v442 = vshrl.u32 %v441, 7
        %v443 = vsub.s32 0, %v442
        %v444 = vrot.slane %v439, %v443
        %v454 = vunpack.c.l.b16 %v431
        %v455 = vunpack.c.l.b16 %v432
        %v456 = vunpack.c.l.b16 %v433
        %v457 = vunpack.c.l.b16 %v434
        %v458 = vunpack.c.l.b16 %v435
        %v459 = vunpack.c.l.b16 %v436
        %v460 = vunpack.c.l.b16 %v437
        %v461 = vunpack.c.l.b16 %v438
        %v462 = vpack.c.b16 %v455, %v454
        %v463 = vpack.c.b16 %v457, %v456
        %v464 = vpack.c.b16 %v459, %v458
        %v465 = vpack.c.b16 %v461, %v460
        %vm470 = vcmask 523264
        %v472 = vsel %vm470, %v427, 0
        %v475 = vsel %vm470, %v428, 0
        %v478 = vsel %vm470, %v429, 0
        %v481 = vsel %vm470, %v430, 0
        %483 = vmatprep.subr.bf16.mxu0 0
        %484 = vmatpush1.bf16.msra.mxu0 0
        %485 = vmatprep.subr.bf16.mxu0 0
        %486 = vmatpush1.bf16.msra.mxu0 0
        %487 = vmatprep.subr.bf16.mxu0 0
        %488 = vmatpush1.bf16.msra.mxu0 0
        %489 = vmatprep.subr.bf16.mxu0 0
        %490 = vmatpush1.bf16.msra.mxu0 0
        %491 = vmatprep.subr.bf16.mxu0 0
        %492 = vmatpush1.bf16.msra.mxu0 %v465
        %493 = vmatprep.subr.bf16.mxu0 0
        %494 = vmatpush1.bf16.msra.mxu0 %v464
        %495 = vmatprep.subr.bf16.mxu0 0
        %496 = vmatpush1.bf16.msra.mxu0 %v463
        %497 = vmatprep.subr.bf16.mxu0 0
        %498 = vmatpush1.bf16.msra.mxu0 %v462
        %499 = vmatprep.subr.bf16.mxu0 0
        %500 = vmatpush2.bf16.msra.mxu0 0
        %501 = vmatprep.subr.bf16.mxu0 0
        %502 = vmatpush2.bf16.msra.mxu0 0
        %503 = vmatprep.subr.bf16.mxu0 0
        %504 = vmatpush2.bf16.msra.mxu0 0
        %505 = vmatprep.subr.bf16.mxu0 0
        %506 = vmatpush2.bf16.msra.mxu0 0
        %507 = vmatprep.subr.bf16.mxu0 0
        %508 = vmatpush2.bf16.msra.mxu0 0
        %509 = vmatprep.subr.bf16.mxu0 0
        %510 = vmatpush2.bf16.msra.mxu0 0
        %511 = vmatprep.subr.bf16.mxu0 0
        %512 = vmatpush2.bf16.msra.mxu0 0
        %513 = vmatprep.subr.bf16.mxu0 0
        %514 = vmatpush2.bf16.msra.mxu0 0
        %515 = vmatprep.mubr.bf16.mxu0 0
        %516 = vmatmul.mubr.bf16.gmra.mxu0 %v472
        %v517 = vpop.f32.mrf.mxu0
        %v518 = vadd.f32 %v444, %v517
        %v519 = vpop.f32.mrf.mxu0
        %v520 = vpop.f32.mrf.mxu0
        %v521 = vadd.f32 %v444, %v520
        %v522 = vpop.f32.mrf.mxu0
        %523 = vmatprep.mubr.bf16.mxu0 0
        %524 = vmatmul.mubr.bf16.gmra.mxu0 %v475
        %v525 = vpop.f32.mrf.mxu0
        %v526 = vadd.f32 %v444, %v525
        %v527 = vpop.f32.mrf.mxu0
        %v528 = vpop.f32.mrf.mxu0
        %v529 = vadd.f32 %v444, %v528
        %v530 = vpop.f32.mrf.mxu0
        %531 = vmatprep.mubr.bf16.mxu0 0
        %532 = vmatmul.mubr.bf16.gmra.mxu0 %v478
        %v533 = vpop.f32.mrf.mxu0
        %v534 = vadd.f32 %v444, %v533
        %v535 = vpop.f32.mrf.mxu0
        %v536 = vpop.f32.mrf.mxu0
        %v537 = vadd.f32 %v444, %v536
        %v538 = vpop.f32.mrf.mxu0
        %539 = vmatprep.mubr.bf16.mxu0 0
        %540 = vmatmul.mubr.bf16.gmra.mxu0 %v481
        %v541 = vpop.f32.mrf.mxu0
        %v542 = vadd.f32 %v444, %v541
        %v543 = vpop.f32.mrf.mxu0
        %v544 = vpop.f32.mrf.mxu0
        %v545 = vpop.f32.mrf.mxu0
        %546 = vdwg.mxu0
        %v547 = vmax.f32 %v518, 0.0
        %v548 = vmax.f32 %v521, 0.0
        %v549 = vmax.f32 %v526, 0.0
        %v550 = vmax.f32 %v529, 0.0
        %v551 = vmax.f32 %v534, 0.0
        %v552 = vmax.f32 %v537, 0.0
        %v553 = vmax.f32 %v542, 0.0
        %v554 = vpack.c.bf16 %v548, %v547
        %v555 = vpack.c.bf16 %v550, %v549
        %v556 = vpack.c.bf16 %v552, %v551
        %v557 = vpack.c.bf16 %v553, %v553
        %v558 = vld [vmem:[%s5] sm:$0xf]
        %v559 = vld [vmem:[%s5 + $0x4] sm:$0xf]
        %v560 = vld [vmem:[%s5 + $0x8] sm:$0xf]
        %v561 = vld [vmem:[%s5 + $0xc] sm:$0xf]
        %v562 = vld [vmem:[%s5 + $0x10] sm:$0xf]
        %v563 = vld [vmem:[%s5 + $0x14] sm:$0xf]
        %v564 = vld [vmem:[%s5 + $0x18] sm:$0xf]
        %v565 = vld [vmem:[%s5 + $0x1c] sm:$0xf]
        %v566 = vld [vmem:[%s6] sm:$0x1]
        %v568 = vlaneseq
        %v569 = vshrl.u32 %v568, 7
        %v570 = vsub.s32 0, %v569
        %v571 = vrot.slane %v566, %v570
        %v581 = vunpack.c.l.b16 %v558
        %v582 = vunpack.c.l.b16 %v559
        %v583 = vunpack.c.l.b16 %v560
        %v584 = vunpack.c.l.b16 %v561
        %v585 = vunpack.c.l.b16 %v562
        %v586 = vunpack.c.l.b16 %v563
        %v587 = vunpack.c.l.b16 %v564
        %v588 = vunpack.c.l.b16 %v565
        %v589 = vpack.c.b16 %v582, %v581
        %v590 = vpack.c.b16 %v584, %v583
        %v591 = vpack.c.b16 %v586, %v585
        %v592 = vpack.c.b16 %v588, %v587
        %v598 = vsel %vm470, %v554, 0
        %v601 = vsel %vm470, %v555, 0
        %v604 = vsel %vm470, %v556, 0
        %v607 = vsel %vm470, %v557, 0
        %609 = vmatprep.subr.bf16.mxu0 0
        %610 = vmatpush1.bf16.msra.mxu0 0
        %611 = vmatprep.subr.bf16.mxu0 0
        %612 = vmatpush1.bf16.msra.mxu0 0
        %613 = vmatprep.subr.bf16.mxu0 0
        %614 = vmatpush1.bf16.msra.mxu0 0
        %615 = vmatprep.subr.bf16.mxu0 0
        %616 = vmatpush1.bf16.msra.mxu0 0
        %617 = vmatprep.subr.bf16.mxu0 0
        %618 = vmatpush1.bf16.msra.mxu0 %v592
        %619 = vmatprep.subr.bf16.mxu0 0
        %620 = vmatpush1.bf16.msra.mxu0 %v591
        %621 = vmatprep.subr.bf16.mxu0 0
        %622 = vmatpush1.bf16.msra.mxu0 %v590
        %623 = vmatprep.subr.bf16.mxu0 0
        %624 = vmatpush1.bf16.msra.mxu0 %v589
        %625 = vmatprep.subr.bf16.mxu0 0
        %626 = vmatpush2.bf16.msra.mxu0 0
        %627 = vmatprep.subr.bf16.mxu0 0
        %628 = vmatpush2.bf16.msra.mxu0 0
        %629 = vmatprep.subr.bf16.mxu0 0
        %630 = vmatpush2.bf16.msra.mxu0 0
        %631 = vmatprep.subr.bf16.mxu0 0
        %632 = vmatpush2.bf16.msra.mxu0 0
        %633 = vmatprep.subr.bf16.mxu0 0
        %634 = vmatpush2.bf16.msra.mxu0 0
        %635 = vmatprep.subr.bf16.mxu0 0
        %636 = vmatpush2.bf16.msra.mxu0 0
        %637 = vmatprep.subr.bf16.mxu0 0
        %638 = vmatpush2.bf16.msra.mxu0 0
        %639 = vmatprep.subr.bf16.mxu0 0
        %640 = vmatpush2.bf16.msra.mxu0 0
        %641 = vmatprep.mubr.bf16.mxu0 0
        %642 = vmatmul.mubr.bf16.gmra.mxu0 %v598
        %v643 = vpop.f32.mrf.mxu0
        %v644 = vadd.f32 %v571, %v643
        %v645 = vpop.f32.mrf.mxu0
        %v646 = vpop.f32.mrf.mxu0
        %v647 = vadd.f32 %v571, %v646
        %v648 = vpop.f32.mrf.mxu0
        %649 = vmatprep.mubr.bf16.mxu0 0
        %650 = vmatmul.mubr.bf16.gmra.mxu0 %v601
        %v651 = vpop.f32.mrf.mxu0
        %v652 = vadd.f32 %v571, %v651
        %v653 = vpop.f32.mrf.mxu0
        %v654 = vpop.f32.mrf.mxu0
        %v655 = vadd.f32 %v571, %v654
        %v656 = vpop.f32.mrf.mxu0
        %657 = vmatprep.mubr.bf16.mxu0 0
        %658 = vmatmul.mubr.bf16.gmra.mxu0 %v604
        %v659 = vpop.f32.mrf.mxu0
        %v660 = vadd.f32 %v571, %v659
        %v661 = vpop.f32.mrf.mxu0
        %v662 = vpop.f32.mrf.mxu0
        %v663 = vadd.f32 %v571, %v662
        %v664 = vpop.f32.mrf.mxu0
        %665 = vmatprep.mubr.bf16.mxu0 0
        %666 = vmatmul.mubr.bf16.gmra.mxu0 %v607
        %v667 = vpop.f32.mrf.mxu0
        %v668 = vadd.f32 %v571, %v667
        %v669 = vpop.f32.mrf.mxu0
        %v670 = vpop.f32.mrf.mxu0
        %v671 = vpop.f32.mrf.mxu0
        %672 = vdwg.mxu0
        %vm673 = vcmask 39936
        %674 = vst.msk [vmem:[%s280] sm:$0xff] %vm673, %v644
        %675 = vst.msk [vmem:[%s280 + $0x8] sm:$0xff] %vm673, %v647
        %676 = vst.msk [vmem:[%s280 + $0x10] sm:$0xff] %vm673, %v652
        %677 = vst.msk [vmem:[%s280 + $0x18] sm:$0xff] %vm673, %v655
        %678 = vst.msk [vmem:[%s280 + $0x20] sm:$0xff] %vm673, %v660
        %679 = vst.msk [vmem:[%s280 + $0x28] sm:$0xff] %vm673, %v663
        %680 = vst.msk [vmem:[%s280 + $0x30] sm:$0xff] %vm673, %v668
        %s681 = sand.u32 %s178, 1
        %s682 = sand.u32 %s178, 1
        %s683 = smul.addr %s682, 56
        %s684 = scalar_lea.vmem [#allocation2], %s683
        // Predicated region
        $region49: #{tpu_custom_call.1} parent=47 // pred_check
          %p685 = pneg %p188
        $region50: #{tpu_custom_call.1} parent=47 // pred_check_branch
          %687 = sbr.rel (%p685) target = $region52
        $region51: #{tpu_custom_call.1} parent=47 // pred_region
          %s688 = smul.u32 7, %s18
          %s689 = ssub.s32 13, %s688
          %p690 = scmp.lt.s32.totalorder %s689, 7
          %s691 = scalar_select %p690, %s689, 7
          %s692 = smul.u32 128, %s691
          %p693 = scmp.ne.s32.totalorder 0, %s692
          %s694 = smul.addr %s688, 8
          %s695 = scalar_lea.vmem %s7, %s694
          // Predicated region
          $region53: #{tpu_custom_call.1} parent=51 // pred_check
            %p696 = pneg %p693
          $region54: #{tpu_custom_call.1} parent=51 // pred_check_branch
            %698 = sbr.rel (%p696) target = $region56
          $region55: #{tpu_custom_call.1} parent=51 // pred_region
            // Predicated region
            $region57: #{tpu_custom_call.1} parent=55 // pred_check
              _
            $region58: #{tpu_custom_call.1} parent=55 // pred_check_branch
              %700 = sbr.rel (0) target = $region60
            $region59: #{tpu_custom_call.1} parent=55 // pred_region
              // Predicated region
              $region79: #{tpu_custom_call.1} parent=59 // pred_check
                _
              $region80: #{tpu_custom_call.1} parent=59 // pred_check_branch
                %763 = sbr.rel (0) target = $region82
              $region81: #{tpu_custom_call.1} parent=59 // pred_region
                %s764 = sdiv.u32.pop %s691, 7
                %s765 = srem.u32.pop %s691, 7
                // While loop
                $region83: #{tpu_custom_call.1} parent=81 // loop_pre_header
                  _
                $region84: #{tpu_custom_call.1} parent=81 // loop_header
                  %s767 = sphi 0, %s769
                  %p768 = scmp.ge.s32.totalorder %s767, %s764
                  %s772 = sphi 0, %s791
                  %s773 = sphi %s684, %s794
                  %s774 = sphi %s695, %s795
                $region85: #{tpu_custom_call.1} parent=81 // loop_header_branch
                  %771 = sbr.rel (%p768) target = $region89
                $region86: #{tpu_custom_call.1} parent=81 // loop_body
                  %v775 = vld [vmem:[%s773] sm:$0xff]
                  %776 = vst [vmem:[%s774] sm:$0xff] %v775
                  %v777 = vld [vmem:[%s773 + $0x8] sm:$0xff]
                  %778 = vst [vmem:[%s774 + $0x8] sm:$0xff] %v777
                  %v779 = vld [vmem:[%s773 + $0x10] sm:$0xff]
                  %780 = vst [vmem:[%s774 + $0x10] sm:$0xff] %v779
                  %v781 = vld [vmem:[%s773 + $0x18] sm:$0xff]
                  %782 = vst [vmem:[%s774 + $0x18] sm:$0xff] %v781
                  %v783 = vld [vmem:[%s773 + $0x20] sm:$0xff]
                  %784 = vst [vmem:[%s774 + $0x20] sm:$0xff] %v783
                  %v785 = vld [vmem:[%s773 + $0x28] sm:$0xff]
                  %786 = vst [vmem:[%s774 + $0x28] sm:$0xff] %v785
                  %v787 = vld [vmem:[%s773 + $0x30] sm:$0xff]
                  %788 = vst [vmem:[%s774 + $0x30] sm:$0xff] %v787
                  %s789 = sadd.s32 1, %s772
                  %p790 = scmp.ge.s32.totalorder %s789, %s764
                  %s791 = scalar_select %p790, 0, %s789
                  %s792 = smul.u32 %s791, 56
                  %s793 = smul.u32 %s791, 56
                  %s794 = scalar_lea.vmem %s684, %s792 [#allocation2]
                  %s795 = scalar_lea.vmem %s695, %s793
                $region87: #{tpu_custom_call.1} parent=81 // loop_footer
                  %s769 = sadd.s32 %s767, 1
                $region88: #{tpu_custom_call.1} parent=81 // loop_footer_branch
                  %766 = sbr.rel target = $region84
                $region89: #{tpu_custom_call.1} parent=81 // loop_exit
                  _
                %s796 = sdiv.u32.pop %s691, 7
                %s797 = srem.u32.pop %s691, 7
                %s798 = smul.u32 %s796, 7
                %s799 = smul.u32 8, %s798
                %s800 = scalar_lea.vmem %s684, %s799 [#allocation2]
                %s801 = smul.u32 8, %s798
                %s802 = scalar_lea.vmem %s695, %s801
                // While loop
                $region90: #{tpu_custom_call.1} parent=81 // loop_pre_header
                  _
                $region91: #{tpu_custom_call.1} parent=81 // loop_header
                  %s804 = sphi 0, %s806
                  %p805 = scmp.ge.s32.totalorder %s804, %s797
                  %s809 = sphi 0, %s816
                  %s810 = sphi %s800, %s819
                  %s811 = sphi %s802, %s820
                $region92: #{tpu_custom_call.1} parent=81 // loop_header_branch
                  %808 = sbr.rel (%p805) target = $region96
                $region93: #{tpu_custom_call.1} parent=81 // loop_body
                  %v812 = vld [vmem:[%s810] sm:$0xff]
                  %813 = vst [vmem:[%s811] sm:$0xff] %v812
                  %s814 = sadd.s32 1, %s809
                  %p815 = scmp.ge.s32.totalorder %s814, %s797
                  %s816 = scalar_select %p815, 0, %s814
                  %s817 = smul.u32 %s816, 8
                  %s818 = smul.u32 %s816, 8
                  %s819 = scalar_lea.vmem %s800, %s817 [#allocation2]
                  %s820 = scalar_lea.vmem %s802, %s818
                $region94: #{tpu_custom_call.1} parent=81 // loop_footer
                  %s806 = sadd.s32 %s804, 1
                $region95: #{tpu_custom_call.1} parent=81 // loop_footer_branch
                  %803 = sbr.rel target = $region91
                $region96: #{tpu_custom_call.1} parent=81 // loop_exit
                  _
              $region82: #{tpu_custom_call.1} parent=59 // pred_fallthru
                _
              // Predicated region
              $region97: #{tpu_custom_call.1} parent=59 // pred_check
                _
              $region98: #{tpu_custom_call.1} parent=59 // pred_check_branch
                %822 = sbr.rel target = $region100
              $region99: #{tpu_custom_call.1} parent=59 // pred_region
                _
              $region100: #{tpu_custom_call.1} parent=59 // pred_fallthru
                _
            $region60: #{tpu_custom_call.1} parent=55 // pred_fallthru
              _
            // Predicated region
            $region61: #{tpu_custom_call.1} parent=55 // pred_check
              _
            $region62: #{tpu_custom_call.1} parent=55 // pred_check_branch
              %702 = sbr.rel target = $region64
            $region63: #{tpu_custom_call.1} parent=55 // pred_region
              %s704 = ssub.s32 256, 1
              %s705 = sdiv.u32.pop %s691, 7
              %s706 = srem.u32.pop %s691, 7
              // While loop
              $region65: #{tpu_custom_call.1} parent=63 // loop_pre_header
                _
              $region66: #{tpu_custom_call.1} parent=63 // loop_header
                %s708 = sphi 0, %s710
                %p709 = scmp.ge.s32.totalorder %s708, %s705
                %s713 = sphi 0, %s732
                %s714 = sphi %s684, %s735
                %s715 = sphi %s695, %s736
              $region67: #{tpu_custom_call.1} parent=63 // loop_header_branch
                %712 = sbr.rel (%p709) target = $region71
              $region68: #{tpu_custom_call.1} parent=63 // loop_body
                %v716 = vld [vmem:[%s714] sm:%s704]
                %717 = vst [vmem:[%s715] sm:%s704] %v716
                %v718 = vld [vmem:[%s714 + $0x8] sm:%s704]
                %719 = vst [vmem:[%s715 + $0x8] sm:%s704] %v718
                %v720 = vld [vmem:[%s714 + $0x10] sm:%s704]
                %721 = vst [vmem:[%s715 + $0x10] sm:%s704] %v720
                %v722 = vld [vmem:[%s714 + $0x18] sm:%s704]
                %723 = vst [vmem:[%s715 + $0x18] sm:%s704] %v722
                %v724 = vld [vmem:[%s714 + $0x20] sm:%s704]
                %725 = vst [vmem:[%s715 + $0x20] sm:%s704] %v724
                %v726 = vld [vmem:[%s714 + $0x28] sm:%s704]
                %727 = vst [vmem:[%s715 + $0x28] sm:%s704] %v726
                %v728 = vld [vmem:[%s714 + $0x30] sm:%s704]
                %729 = vst [vmem:[%s715 + $0x30] sm:%s704] %v728
                %s730 = sadd.s32 1, %s713
                %p731 = scmp.ge.s32.totalorder %s730, %s705
                %s732 = scalar_select %p731, 0, %s730
                %s733 = smul.u32 %s732, 56
                %s734 = smul.u32 %s732, 56
                %s735 = scalar_lea.vmem %s684, %s733 [#allocation2]
                %s736 = scalar_lea.vmem %s695, %s734
              $region69: #{tpu_custom_call.1} parent=63 // loop_footer
                %s710 = sadd.s32 %s708, 1
              $region70: #{tpu_custom_call.1} parent=63 // loop_footer_branch
                %707 = sbr.rel target = $region66
              $region71: #{tpu_custom_call.1} parent=63 // loop_exit
                _
              %s737 = sdiv.u32.pop %s691, 7
              %s738 = srem.u32.pop %s691, 7
              %s739 = smul.u32 %s737, 7
              %s740 = smul.u32 8, %s739
              %s741 = scalar_lea.vmem %s684, %s740 [#allocation2]
              %s742 = smul.u32 8, %s739
              %s743 = scalar_lea.vmem %s695, %s742
              // While loop
              $region72: #{tpu_custom_call.1} parent=63 // loop_pre_header
                _
              $region73: #{tpu_custom_call.1} parent=63 // loop_header
                %s745 = sphi 0, %s747
                %p746 = scmp.ge.s32.totalorder %s745, %s738
                %s750 = sphi 0, %s757
                %s751 = sphi %s741, %s760
                %s752 = sphi %s743, %s761
              $region74: #{tpu_custom_call.1} parent=63 // loop_header_branch
                %749 = sbr.rel (%p746) target = $region78
              $region75: #{tpu_custom_call.1} parent=63 // loop_body
                %v753 = vld [vmem:[%s751] sm:%s704]
                %754 = vst [vmem:[%s752] sm:%s704] %v753
                %s755 = sadd.s32 1, %s750
                %p756 = scmp.ge.s32.totalorder %s755, %s738
                %s757 = scalar_select %p756, 0, %s755
                %s758 = smul.u32 %s757, 8
                %s759 = smul.u32 %s757, 8
                %s760 = scalar_lea.vmem %s741, %s758 [#allocation2]
                %s761 = scalar_lea.vmem %s743, %s759
              $region76: #{tpu_custom_call.1} parent=63 // loop_footer
                %s747 = sadd.s32 %s745, 1
              $region77: #{tpu_custom_call.1} parent=63 // loop_footer_branch
                %744 = sbr.rel target = $region73
              $region78: #{tpu_custom_call.1} parent=63 // loop_exit
                _
            $region64: #{tpu_custom_call.1} parent=55 // pred_fallthru
              _
          $region56: #{tpu_custom_call.1} parent=51 // pred_fallthru
            _
          %823 = vnop
        $region52: #{tpu_custom_call.1} parent=47 // pred_fallthru
          _
      $region48: #{tpu_custom_call.1} parent=5 // pred_fallthru
        _
      %p824 = scmp.le.s32.totalorder 2, %s13
      // Predicated region
      $region101: #{tpu_custom_call.1} parent=5 // pred_check
        %p825 = pneg %p824
      $region102: #{tpu_custom_call.1} parent=5 // pred_check_branch
        %827 = sbr.rel (%p825) target = $region104
      $region103: #{tpu_custom_call.1} parent=5 // pred_region
        %s828 = ssub.s32 %s13, 2
        // Predicated region
        $region105: #{tpu_custom_call.1} parent=103 // pred_check
          %p829 = pneg %p194
        $region106: #{tpu_custom_call.1} parent=103 // pred_check_branch
          %831 = sbr.rel (%p829) target = $region108
        $region107: #{tpu_custom_call.1} parent=103 // pred_region
          %s832 = sand.u32 %s179, 1
          %s833 = sand.u32 %s179, 1
          %s834 = smul.addr %s833, 56
          %s835 = scalar_lea.vmem [#allocation2], %s834
        $region108: #{tpu_custom_call.1} parent=103 // pred_fallthru
          _
      $region104: #{tpu_custom_call.1} parent=5 // pred_fallthru
        _
    $region6: #{tpu_custom_call.1} parent=1 // loop_footer
      %s17 = sadd.s32 1, %s13
    $region7: #{tpu_custom_call.1} parent=1 // loop_footer_branch
      %12 = sbr.rel target = $region3
    $region8: #{tpu_custom_call.1} parent=1 // loop_exit
      _

</llo_original>
